<compile_context>
chip_gen: v5e
topology: v5e:2x2
jax: 0.10.0
libtpu: 0.0.40
codegen_flags: <defaults>
</compile_context>

<pallas_src>
from types import SimpleNamespace

import jax
import jax.numpy as jnp
from jax.experimental import pallas as pl
from jax.experimental.pallas import tpu as pltpu


def _round_up(x, m):
    return ((x + m - 1) // m) * m


def _vmem_cap_bytes():
    """Per-generation VMEM budget with ~20% headroom (v7x: ~51 MiB, v5e/v6e: ~102 MiB)."""
    try:
        cap = int(pltpu.get_tpu_info().vmem_capacity_bytes)
    except Exception:
        cap = 128 * (1 << 20)
    return int(cap * 0.8)


# ---------------------------------------------------------------------------
# Pallas kernel body: one (motif, layer) grid step.
#   l==0   : h <- X
#   every l: h <- relu( A_hat @ (h @ W_l) + b_l )
#   l==L-1 : O <- h
# ---------------------------------------------------------------------------
def _motif_gcn_kernel(a_ref, x_ref, w_ref, b_ref, o_ref, h_ref):
    # a_ref : [Np, Np]  bf16  normalized adjacency of this motif (resident in l)
    # x_ref : [Np, Fp]  bf16  node features (shared across motifs, resident)
    # w_ref : [Fp, Fp]  bf16  this layer's zero-padded weights
    # b_ref : [1,  Fp]  f32   this layer's zero-padded bias
    # o_ref : [Np, Fp]  f32   this motif's output (resident across l)
    # h_ref : [Np, Fp]  bf16  VMEM scratch: running features
    l = pl.program_id(1)
    num_layers = pl.num_programs(1)

    @pl.when(l == 0)
    def _():
        h_ref[...] = x_ref[...]

    # X @ W  (MXU, bf16 in / f32 accumulate)
    xw = jnp.dot(h_ref[...], w_ref[...], preferred_element_type=jnp.float32)
    # A_hat @ (X @ W)  (MXU) -- read A from the resident input buffer, no hoisted copy.
    axw = jnp.dot(a_ref[...], xw.astype(jnp.bfloat16),
                  preferred_element_type=jnp.float32)
    h_new = jnp.maximum(axw + b_ref[...], 0.0)           # f32 bias + ReLU (VPU)
    h_ref[...] = h_new.astype(h_ref.dtype)               # bf16 carry to next layer

    @pl.when(l == num_layers - 1)
    def _():
        o_ref[...] = h_new.astype(o_ref.dtype)


@jax.jit
def _motif_gcn_fused(a_hat, x_pad, w_stack, b_stack):
    num_motifs, n_pad, _ = a_hat.shape
    num_layers, f_pad = w_stack.shape[1], w_stack.shape[2]

    # Per-step VMEM working set (X counted once: constant index_map -> resident;
    # only one layer's W is live; include f32 intermediates + h scratch).
    est = (2 * n_pad * n_pad * 2          # A_hat (bf16), double-buffered over motifs
           + n_pad * f_pad * 2            # X (bf16), resident
           + 2 * f_pad * f_pad * 2        # W_l (bf16), double-buffered over layers
           + 2 * f_pad * 4                # b_l (f32)
           + 2 * n_pad * f_pad * 4        # output block (f32)
           + n_pad * f_pad * 2            # h scratch (bf16)
           + 3 * n_pad * f_pad * 4)       # live f32 intermediates (xw, axw, h_new)
    est += est // 4 + (1 << 20)           # compiler internal-scratch margin

    cp = dict(dimension_semantics=("parallel", "arbitrary"))
    if est > 16 * (1 << 20):              # only raise above the conservative default
        cp["vmem_limit_bytes"] = int(min(est, _vmem_cap_bytes()))

    cost = pl.CostEstimate(
        flops=num_motifs * num_layers * (2 * n_pad * f_pad * f_pad
                                         + 2 * n_pad * n_pad * f_pad),
        transcendentals=0,
        bytes_accessed=(num_motifs * n_pad * n_pad * 2          # A (once per motif)
                        + n_pad * f_pad * 2                     # X (once)
                        + num_motifs * num_layers * f_pad * f_pad * 2  # W
                        + num_motifs * num_layers * f_pad * 4          # b
                        + num_motifs * n_pad * f_pad * 4),             # out
    )

    return pl.pallas_call(
        _motif_gcn_kernel,
        out_shape=jax.ShapeDtypeStruct((num_motifs, n_pad, f_pad), jnp.float32),
        grid=(num_motifs, num_layers),
        in_specs=[
            # A_hat: changes with motif only -> stays resident across layers.
            pl.BlockSpec((None, n_pad, n_pad), lambda m, l: (m, 0, 0)),
            # X: constant index_map -> fetched once, resident for the whole grid.
            pl.BlockSpec((n_pad, f_pad), lambda m, l: (0, 0)),
            # W / b: one layer slab per step -> next layer's DMA overlaps compute.
            pl.BlockSpec((None, None, f_pad, f_pad), lambda m, l: (m, l, 0, 0)),
            pl.BlockSpec((None, None, 1, f_pad), lambda m, l: (m, l, 0, 0)),
        ],
        out_specs=pl.BlockSpec((None, n_pad, f_pad), lambda m, l: (m, 0, 0)),
        scratch_shapes=[pltpu.VMEM((n_pad, f_pad), jnp.bfloat16)],
        compiler_params=pltpu.CompilerParams(**cp),
        cost_estimate=cost,
    )(a_hat, x_pad, w_stack, b_stack)


# ---------------------------------------------------------------------------
# Plain-JAX glue: dense symmetric-normalized adjacency (A + I)
# ---------------------------------------------------------------------------
def normalized_adjacency(edge_index, num_nodes):
    """edge_index: int32 [2, E], row 0 = source, row 1 = target.
    Returns D^{-1/2} (A + I) D^{-1/2}, A[target, source] = 1 (PyG flow)."""
    src, dst = edge_index[0], edge_index[1]
    adj = jnp.zeros((num_nodes, num_nodes), jnp.float32)
    adj = adj.at[dst, src].add(1.0)                     # scatter-add, like PyG
    adj = adj + jnp.eye(num_nodes, dtype=jnp.float32)   # self loops
    deg = adj.sum(axis=1)
    dinv = jnp.where(deg > 0.0, 1.0 / jnp.sqrt(deg), 0.0)
    return dinv[:, None] * adj * dinv[None, :]


# ---------------------------------------------------------------------------
# Parameter construction (deterministic glorot-like init, zero bias)
# ---------------------------------------------------------------------------
def init_motif_gcn_params(key, args, node_feature_num):
    dims = [node_feature_num] + list(args.gcn_filters)
    params = []
    for _ in range(args.motif_num):
        stack = []
        for f_in, f_out in zip(dims[:-1], dims[1:]):
            key, sub = jax.random.split(key)
            limit = jnp.sqrt(6.0 / (f_in + f_out))
            w = jax.random.uniform(sub, (f_in, f_out), jnp.float32, -limit, limit)
            b = jnp.zeros((f_out,), jnp.float32)        # GCNConv bias init
            stack.append((w, b))
        params.append(stack)
    return params


# ---------------------------------------------------------------------------
# Motif_GCN_Layer forward: all motifs + all layers in ONE pallas_call.
# ---------------------------------------------------------------------------
def motif_gcn_forward(params, features, motif_edge_list, num_nodes):
    num_motifs = len(motif_edge_list)
    assert num_motifs == len(params)
    num_layers = len(params[0])
    feat_dims = [features.shape[1]] + [w.shape[1] for (w, _) in params[0]]
    # 128-multiple padding on both axes: lane-dense A/X/W/out, full MXU
    # contractions.  (If real feature dims land in (128, 256], consider 256
    # on v6e/v7x to fill the 256x256 MXU; 128 is native on v5e and correct
    # at today's tiny dims everywhere.)
    f_pad = _round_up(max(feat_dims), 128)
    n_pad = _round_up(num_nodes, 128)
    f_last = feat_dims[-1]

    # Dense normalized adjacencies, stacked over motifs, padded, bf16.
    a_hat = jnp.stack([normalized_adjacency(e, num_nodes)
                       for e in motif_edge_list])
    if n_pad != num_nodes:
        a_hat = jnp.pad(a_hat, ((0, 0),
                                (0, n_pad - num_nodes),
                                (0, n_pad - num_nodes)))
    a_hat = a_hat.astype(jnp.bfloat16)

    # Zero-padded features, cast to bf16 host-side (halves X DMA, no in-kernel cast).
    x_pad = jnp.zeros((n_pad, f_pad), jnp.float32)
    x_pad = x_pad.at[:num_nodes, :features.shape[1]].set(
        features.astype(jnp.float32))
    x_pad = x_pad.astype(jnp.bfloat16)

    # Zero-padded, stacked weights / biases: [M, L, Fp, Fp] and [M, L, 1, Fp].
    w_stack = jnp.zeros((num_motifs, num_layers, f_pad, f_pad), jnp.float32)
    b_stack = jnp.zeros((num_motifs, num_layers, 1, f_pad), jnp.float32)
    for i, stack in enumerate(params):
        for l, (w, b) in enumerate(stack):
            w_stack = w_stack.at[i, l, :w.shape[0], :w.shape[1]].set(w)
            b_stack = b_stack.at[i, l, 0, :b.shape[0]].set(b)
    w_stack = w_stack.astype(jnp.bfloat16)

    out = _motif_gcn_fused(a_hat, x_pad, w_stack, b_stack)   # [M, Np, Fp]
    return [out[i, :num_nodes, :f_last] for i in range(num_motifs)]


# ---------------------------------------------------------------------------
if __name__ == "__main__":
    args = SimpleNamespace(gcn_filters=[32, 16], motif_num=2)
    node_feature_num = 8
    num_nodes = 16
    num_edges = 24

    key = jax.random.PRNGKey(0)
    key, kf, ke0, ke1, kp = jax.random.split(key, 5)

    features = jax.random.normal(kf, (num_nodes, node_feature_num), jnp.float32)
    motif_edge_list = [
        jax.random.randint(ke0, (2, num_edges), 0, num_nodes, dtype=jnp.int32),
        jax.random.randint(ke1, (2, num_edges), 0, num_nodes, dtype=jnp.int32),
    ]

    params = init_motif_gcn_params(kp, args, node_feature_num)

    outputs = motif_gcn_forward(params, features, motif_edge_list, num_nodes)
    outputs = [jax.block_until_ready(o) for o in outputs]

    # Sanity check vs pure-JAX f32 reference.
    # Tolerance loosened (~2e-2) because MXU inputs and the inter-layer carry
    # are bf16; re-validate if gcn_filters deepen.
    for i, o in enumerate(outputs):
        a_hat = normalized_adjacency(motif_edge_list[i], num_nodes)
        h = features
        for (w, b) in params[i]:
            h = jnp.maximum(a_hat @ (h @ w) + b[None, :], 0.0)
        assert o.shape == (num_nodes, args.gcn_filters[-1])
        err = float(jnp.max(jnp.abs(o - h)))
        assert jnp.allclose(o, h, atol=2e-2, rtol=2e-2), f"max abs err {err}"

    print("KERNEL_OK")
</pallas_src>

<mosaic_0001>
module attributes {stable_mosaic.version = 11 : i64} {
  func.func @_motif_gcn_kernel(%arg0: i32, %arg1: i32, %arg2: memref<1x128x128xbf16, #tpu.memory_space<vmem>>, %arg3: memref<128x128xbf16, #tpu.memory_space<vmem>>, %arg4: memref<1x1x128x128xbf16, #tpu.memory_space<vmem>>, %arg5: memref<1x1x1x128xf32, #tpu.memory_space<vmem>>, %arg6: memref<1x128x128xf32, #tpu.memory_space<vmem>>, %arg7: memref<128x128xbf16, #tpu.memory_space<vmem>>) attributes {dimension_semantics = [#tpu.dimension_semantics<parallel>, #tpu.dimension_semantics<arbitrary>], iteration_bounds = array<i64: 2, 2>, scalar_prefetch = 0 : i64, scratch_operands = 1 : i64, tpu.core_type = #tpu.core_type<tc>, window_params = [{transform_indices = @transform_0, window_bounds = array<i64: 1, 128, 128>}, {pipeline_mode = #tpu.pipeline_mode<synchronous>, transform_indices = @transform_1, window_bounds = array<i64: 128, 128>}, {transform_indices = @transform_2, window_bounds = array<i64: 1, 1, 128, 128>}, {transform_indices = @transform_3, window_bounds = array<i64: 1, 1, 1, 128>}, {transform_indices = @transform_4, window_bounds = array<i64: 1, 128, 128>}]} {
    %c0_i32 = arith.constant 0 : i32
    %0 = arith.cmpi eq, %arg1, %c0_i32 : i32
    %1 = arith.extui %0 : i1 to i32
    %c0_i32_0 = arith.constant 0 : i32
    %2 = arith.cmpi ne, %1, %c0_i32_0 : i32
    scf.if %2 {
      %c0_18 = arith.constant 0 : index
      %c0_19 = arith.constant 0 : index
      %22 = vector.load %arg3[%c0_18, %c0_19] : memref<128x128xbf16, #tpu.memory_space<vmem>>, vector<128x128xbf16>
      %c0_20 = arith.constant 0 : index
      %c0_21 = arith.constant 0 : index
      %23 = vector.load %arg7[%c0_20, %c0_21] : memref<128x128xbf16, #tpu.memory_space<vmem>>, vector<128x128xbf16>
      tpu.vector_store %arg7[%c0_20, %c0_21], %22 {strides = array<i32>} : memref<128x128xbf16, #tpu.memory_space<vmem>>, vector<128x128xbf16>,
    } else {
    }
    %c0 = arith.constant 0 : index
    %c0_1 = arith.constant 0 : index
    %3 = vector.load %arg7[%c0, %c0_1] : memref<128x128xbf16, #tpu.memory_space<vmem>>, vector<128x128xbf16>
    %c0_2 = arith.constant 0 : index
    %c0_3 = arith.constant 0 : index
    %c0_4 = arith.constant 0 : index
    %c0_5 = arith.constant 0 : index
    %4 = vector.load %arg4[%c0_2, %c0_3, %c0_4, %c0_5] : memref<1x1x128x128xbf16, #tpu.memory_space<vmem>>, vector<1x1x128x128xbf16>
    %5 = vector.shape_cast %4 : vector<1x1x128x128xbf16> to vector<128x128xbf16>
    %cst = arith.constant dense<0.000000e+00> : vector<128x128xf32>
    %6 = tpu.matmul %3, %5, %cst {dimension_numbers = #tpu.dot_dimension_numbers<[1], [0], [0], [1], [0, 0, 1, 1], [], []>} : vector<128x128xbf16>, vector<128x128xbf16>, vector<128x128xf32> -> vector<128x128xf32>
    %c0_6 = arith.constant 0 : index
    %c0_7 = arith.constant 0 : index
    %c0_8 = arith.constant 0 : index
    %7 = vector.load %arg2[%c0_6, %c0_7, %c0_8] : memref<1x128x128xbf16, #tpu.memory_space<vmem>>, vector<1x128x128xbf16>
    %8 = vector.shape_cast %7 : vector<1x128x128xbf16> to vector<128x128xbf16>
    %9 = arith.truncf %6 : vector<128x128xf32> to vector<128x128xbf16>
    %cst_9 = arith.constant dense<0.000000e+00> : vector<128x128xf32>
    %10 = tpu.matmul %8, %9, %cst_9 {dimension_numbers = #tpu.dot_dimension_numbers<[1], [0], [0], [1], [0, 0, 1, 1], [], []>} : vector<128x128xbf16>, vector<128x128xbf16>, vector<128x128xf32> -> vector<128x128xf32>
    %c0_10 = arith.constant 0 : index
    %c0_11 = arith.constant 0 : index
    %c0_12 = arith.constant 0 : index
    %c0_13 = arith.constant 0 : index
    %11 = vector.load %arg5[%c0_10, %c0_11, %c0_12, %c0_13] : memref<1x1x1x128xf32, #tpu.memory_space<vmem>>, vector<1x1x1x128xf32>
    %12 = vector.shape_cast %11 : vector<1x1x1x128xf32> to vector<1x128xf32>
    %13 = vector.broadcast %12 : vector<1x128xf32> to vector<128x128xf32>
    %14 = arith.addf %10, %13 : vector<128x128xf32>
    %cst_14 = arith.constant 0.000000e+00 : f32
    %15 = vector.broadcast %cst_14 : f32 to vector<128x128xf32>
    %16 = arith.maximumf %14, %15 : vector<128x128xf32>
    %17 = arith.truncf %16 : vector<128x128xf32> to vector<128x128xbf16>
    %c0_15 = arith.constant 0 : index
    %c0_16 = arith.constant 0 : index
    %18 = vector.load %arg7[%c0_15, %c0_16] : memref<128x128xbf16, #tpu.memory_space<vmem>>, vector<128x128xbf16>
    tpu.vector_store %arg7[%c0_15, %c0_16], %17 {strides = array<i32>} : memref<128x128xbf16, #tpu.memory_space<vmem>>, vector<128x128xbf16>,
    %c1_i32 = arith.constant 1 : i32
    %19 = arith.cmpi eq, %arg1, %c1_i32 : i32
    %20 = arith.extui %19 : i1 to i32
    %c0_i32_17 = arith.constant 0 : i32
    %21 = arith.cmpi ne, %20, %c0_i32_17 : i32
    scf.if %21 {
      %c0_18 = arith.constant 0 : index
      %c0_19 = arith.constant 0 : index
      %c0_20 = arith.constant 0 : index
      %22 = vector.load %arg6[%c0_18, %c0_19, %c0_20] : memref<1x128x128xf32, #tpu.memory_space<vmem>>, vector<1x128x128xf32>
      %23 = vector.shape_cast %22 : vector<1x128x128xf32> to vector<128x128xf32>
      %24 = vector.shape_cast %16 : vector<128x128xf32> to vector<1x128x128xf32>
      tpu.vector_store %arg6[%c0_18, %c0_19, %c0_20], %24 {strides = array<i32>} : memref<1x128x128xf32, #tpu.memory_space<vmem>>, vector<1x128x128xf32>,
    } else {
    }
    return
  }
  func.func @transform_0(%arg0: i32, %arg1: i32) -> (i32, i32, i32) {
    %c0_i32 = arith.constant 0 : i32
    %c0_i32_0 = arith.constant 0 : i32
    %c0_i32_1 = arith.constant 0 : i32
    return %arg0, %c0_i32, %c0_i32_0 : i32, i32, i32
  }
  func.func @transform_1(%arg0: i32, %arg1: i32) -> (i32, i32) {
    %c0_i32 = arith.constant 0 : i32
    %c0_i32_0 = arith.constant 0 : i32
    %c0_i32_1 = arith.constant 0 : i32
    return %c0_i32, %c0_i32_0 : i32, i32
  }
  func.func @transform_2(%arg0: i32, %arg1: i32) -> (i32, i32, i32, i32) {
    %c0_i32 = arith.constant 0 : i32
    %c0_i32_0 = arith.constant 0 : i32
    %c0_i32_1 = arith.constant 0 : i32
    return %arg0, %arg1, %c0_i32, %c0_i32_0 : i32, i32, i32, i32
  }
  func.func @transform_3(%arg0: i32, %arg1: i32) -> (i32, i32, i32, i32) {
    %c0_i32 = arith.constant 0 : i32
    %c0_i32_0 = arith.constant 0 : i32
    %c0_i32_1 = arith.constant 0 : i32
    return %arg0, %arg1, %c0_i32, %c0_i32_0 : i32, i32, i32, i32
  }
  func.func @transform_4(%arg0: i32, %arg1: i32) -> (i32, i32, i32) {
    %c0_i32 = arith.constant 0 : i32
    %c0_i32_0 = arith.constant 0 : i32
    %c0_i32_1 = arith.constant 0 : i32
    return %arg0, %c0_i32, %c0_i32_0 : i32, i32, i32
  }
}

</mosaic_0001>

<llo_original>
// kernel: _motif_gcn_fused.1
$region0: #{_motif_gcn_fused.1}
  #allocation0 [shape = 'u32[]', space=smem, size = 0x4, offset = 0x4, fixed_abs, tag = 'smem constant byte address 0x4 - core index']
  #allocation1 [shape = 'u32[72,128]{1,0:T(1,128)}', space=vmem, size = 0x9000, scoped, tag = 'internal scratch']
  #allocation2 [shape = 'bf16[128,128]{1,0:T(8,128)(2,1)}', space=vmem, size = 0x8000, scoped, tag = 'scratch operand']
  %s0 = inlined_call_operand.hbm [shape: bf16[2,128,128], index: 0, kind: input, shape index: {}]
  %s1 = inlined_call_operand.hbm [shape: bf16[128,128], index: 1, kind: input, shape index: {}]
  %s2 = inlined_call_operand.hbm [shape: bf16[2,2,128,128], index: 2, kind: input, shape index: {}]
  %s3 = inlined_call_operand.hbm [shape: f32[2,2,1,128], index: 3, kind: input, shape index: {}]
  %s4 = inlined_call_operand.hbm [shape: f32[2,128,128], index: 4, kind: output, shape index: {}]
  %s5 = sld [smem:[#allocation0]]
  $region73: #{_motif_gcn_fused.1} parent=0
    _
  %s7 = ssub.s32 1, %s5
  %s8 = scalar_select 0, %s7, %s5
  $region1: #{_motif_gcn_fused.1} parent=0
    #allocation3 [shape = 'u8[65536]{0}', space=vmem, size = 0x10000, scoped, tag = 'input window, operand 0']
    #allocation4 [shape = 's32[2]{0}', space=sflag, size = 0x8, scoped, tag = 'scoped memory for _motif_gcn_fused.1']
    #allocation5 [shape = 's32[2]{0}', space=sflag, size = 0x8, scoped, tag = 'scoped memory for _motif_gcn_fused.1']
    #allocation6 [shape = 'u8[32768]{0}', space=vmem, size = 0x8000, scoped, tag = 'input window, operand 1, single buffered']
    #allocation7 [shape = 's32[1]{0}', space=sflag, size = 0x4, scoped, tag = 'scoped memory for _motif_gcn_fused.1']
    #allocation8 [shape = 'u8[65536]{0}', space=vmem, size = 0x10000, scoped, tag = 'input window, operand 2']
    #allocation9 [shape = 'u8[1024]{0}', space=vmem, size = 0x400, scoped, tag = 'input window, operand 3']
    #allocation10 [shape = 'u8[131072]{0}', space=vmem, size = 0x20000, scoped, tag = 'output window, operand 0']
    %9 = vsyncpa [#allocation4], 0
    %s10 = scalar_lea.sflag [#allocation4], 1
    %11 = vsyncpa %s10, 0
    %12 = vsyncpa [#allocation7], 0
    %13 = vsyncpa [#allocation5], 0
    %s14 = scalar_lea.sflag [#allocation5], 1
    %15 = vsyncpa %s14, 0
    loop: start=0, step=1, limit=6
    $region2: #{_motif_gcn_fused.1} parent=1 // loop_pre_header
      _
    $region3: #{_motif_gcn_fused.1} parent=1 // loop_header
      %s17 = sphi 0, %s21
      %p18 = scmp.ge.s32.totalorder %s17, 6
      %s24 = sphi 0, %s36
      %s25 = sphi 0, %s32
      %s26 = sphi 0, %s24
      %s27 = sphi 0, %s25
      %s28 = sphi 0, %s26
      %s29 = sphi 0, %s27
      %s39 = sphi 0, %s41
      %s42 = sphi 0, %s39
      %s43 = sphi 0, %s42
      %s59 = sphi 0, %s43
      %s63 = sphi 0, %s63
      %s65 = sphi 0, %s63
      %s66 = sphi 0, %s65
      %s80 = sphi 0, %s66
      %s88 = sphi 0, %s90
      %s91 = sphi 0, %s88
      %s92 = sphi 0, %s91
      %s108 = sphi 0, %s92
      %s116 = sphi 0, %s118
      %s119 = sphi 0, %s116
      %s120 = sphi 0, %s119
      %s136 = sphi 0, %s120
      %s142 = sphi 0, %s144
      %s145 = sphi 0, %s142
      %s146 = sphi 0, %s145
      %s162 = sphi 0, %s146
    $region4: #{_motif_gcn_fused.1} parent=1 // loop_header_branch
      %20 = sbr.rel (%p18) target = $region8
    $region5: #{_motif_gcn_fused.1} parent=1 // loop_body
      %s22 = ssub.s32 %s17, 1
      %s23 = ssub.s32 %s17, 2
      %s30 = sadd.s32 1, %s25
      %p31 = scmp.ge.s32.totalorder %s30, 2
      %s32 = scalar_select %p31, 0, %s30
      %s33 = sadd.s32 1, %s24
      %s34 = scalar_select %p31, %s33, %s24
      %p35 = scmp.ge.s32.totalorder %s34, 2
      %s36 = scalar_select %p35, 0, %s34
      %s37 = ssub.s32 %s24, %s36
      %p38 = scmp.eq.s32.totalorder %s37, 0
      %s40 = sadd.s32 %s39, 1
      %s41 = scalar_select %p38, %s39, %s40
      %p44 = pneg %p38
      %p45 = scmp.eq.s32.totalorder %s17, 3
      %p46 = por %p44, %p45
      %p47 = scmp.ne.s32.totalorder %s39, %s42
      %p48 = scmp.eq.s32.totalorder %s17, 0
      %p49 = por %p47, %p48
      %p50 = scmp.ne.s32.totalorder %s39, %s42
      %p51 = scmp.eq.s32.totalorder %s22, 3
      %p52 = por %p50, %p51
      %p53 = scmp.ne.s32.totalorder %s42, %s43
      %p54 = scmp.eq.s32.totalorder %s22, 0
      %p55 = por %p53, %p54
      %p56 = scmp.ne.s32.totalorder %s42, %s43
      %p57 = scmp.eq.s32.totalorder %s23, 3
      %p58 = por %p56, %p57
      %p60 = scmp.ne.s32.totalorder %s43, %s59
      %p61 = scmp.eq.s32.totalorder %s23, 0
      %p62 = por %p60, %p61
      %s64 = sadd.s32 %s63, 1
      %p67 = scmp.eq.s32.totalorder %s17, 3
      %p68 = scmp.ne.s32.totalorder %s63, %s65
      %p69 = scmp.eq.s32.totalorder %s17, 0
      %p70 = por %p68, %p69
      %p71 = scmp.ne.s32.totalorder %s63, %s65
      %p72 = scmp.eq.s32.totalorder %s22, 3
      %p73 = por %p71, %p72
      %p74 = scmp.ne.s32.totalorder %s65, %s66
      %p75 = scmp.eq.s32.totalorder %s22, 0
      %p76 = por %p74, %p75
      %p77 = scmp.ne.s32.totalorder %s65, %s66
      %p78 = scmp.eq.s32.totalorder %s23, 3
      %p79 = por %p77, %p78
      %p81 = scmp.ne.s32.totalorder %s66, %s80
      %p82 = scmp.eq.s32.totalorder %s23, 0
      %p83 = por %p81, %p82
      %s84 = ssub.s32 %s24, %s36
      %s85 = ssub.s32 %s25, %s32
      %s86 = sor.u32 %s84, %s85
      %p87 = scmp.eq.s32.totalorder %s86, 0
      %s89 = sadd.s32 %s88, 1
      %s90 = scalar_select %p87, %s88, %s89
      %p93 = pneg %p87
      %p94 = scmp.eq.s32.totalorder %s17, 3
      %p95 = por %p93, %p94
      %p96 = scmp.ne.s32.totalorder %s88, %s91
      %p97 = scmp.eq.s32.totalorder %s17, 0
      %p98 = por %p96, %p97
      %p99 = scmp.ne.s32.totalorder %s88, %s91
      %p100 = scmp.eq.s32.totalorder %s22, 3
      %p101 = por %p99, %p100
      %p102 = scmp.ne.s32.totalorder %s91, %s92
      %p103 = scmp.eq.s32.totalorder %s22, 0
      %p104 = por %p102, %p103
      %p105 = scmp.ne.s32.totalorder %s91, %s92
      %p106 = scmp.eq.s32.totalorder %s23, 3
      %p107 = por %p105, %p106
      %p109 = scmp.ne.s32.totalorder %s92, %s108
      %p110 = scmp.eq.s32.totalorder %s23, 0
      %p111 = por %p109, %p110
      %s112 = ssub.s32 %s24, %s36
      %s113 = ssub.s32 %s25, %s32
      %s114 = sor.u32 %s112, %s113
      %p115 = scmp.eq.s32.totalorder %s114, 0
      %s117 = sadd.s32 %s116, 1
      %s118 = scalar_select %p115, %s116, %s117
      %p121 = pneg %p115
      %p122 = scmp.eq.s32.totalorder %s17, 3
      %p123 = por %p121, %p122
      %p124 = scmp.ne.s32.totalorder %s116, %s119
      %p125 = scmp.eq.s32.totalorder %s17, 0
      %p126 = por %p124, %p125
      %p127 = scmp.ne.s32.totalorder %s116, %s119
      %p128 = scmp.eq.s32.totalorder %s22, 3
      %p129 = por %p127, %p128
      %p130 = scmp.ne.s32.totalorder %s119, %s120
      %p131 = scmp.eq.s32.totalorder %s22, 0
      %p132 = por %p130, %p131
      %p133 = scmp.ne.s32.totalorder %s119, %s120
      %p134 = scmp.eq.s32.totalorder %s23, 3
      %p135 = por %p133, %p134
      %p137 = scmp.ne.s32.totalorder %s120, %s136
      %p138 = scmp.eq.s32.totalorder %s23, 0
      %p139 = por %p137, %p138
      %s140 = ssub.s32 %s24, %s36
      %p141 = scmp.eq.s32.totalorder %s140, 0
      %s143 = sadd.s32 %s142, 1
      %s144 = scalar_select %p141, %s142, %s143
      %p147 = pneg %p141
      %p148 = scmp.eq.s32.totalorder %s17, 3
      %p149 = por %p147, %p148
      %p150 = scmp.ne.s32.totalorder %s142, %s145
      %p151 = scmp.eq.s32.totalorder %s17, 0
      %p152 = por %p150, %p151
      %p153 = scmp.ne.s32.totalorder %s142, %s145
      %p154 = scmp.eq.s32.totalorder %s22, 3
      %p155 = por %p153, %p154
      %p156 = scmp.ne.s32.totalorder %s145, %s146
      %p157 = scmp.eq.s32.totalorder %s22, 0
      %p158 = por %p156, %p157
      %p159 = scmp.ne.s32.totalorder %s145, %s146
      %p160 = scmp.eq.s32.totalorder %s23, 3
      %p161 = por %p159, %p160
      %p163 = scmp.ne.s32.totalorder %s146, %s162
      %p164 = scmp.eq.s32.totalorder %s23, 0
      %p165 = por %p163, %p164
      %p166 = scmp.le.s32.totalorder 1, %s17
      %p167 = scmp.lt.s32.totalorder %s17, 5
      %p168 = pnand %p166, %p167
      %p169 = pneg %p168
      // Predicated region
      $region9: #{_motif_gcn_fused.1} parent=5 // pred_check
        _
      $region10: #{_motif_gcn_fused.1} parent=5 // pred_check_branch
        %171 = sbr.rel (%p168) target = $region12
      $region11: #{_motif_gcn_fused.1} parent=5 // pred_region
        %s172 = ssub.s32 %s17, 1
        // Predicated region
        $region13: #{_motif_gcn_fused.1} parent=11 // pred_check
          %p173 = pneg %p76
        $region14: #{_motif_gcn_fused.1} parent=11 // pred_check_branch
          %175 = sbr.rel (%p173) target = $region16
        $region15: #{_motif_gcn_fused.1} parent=11 // pred_region
          %177 = vsyncadd [#allocation7], 0
          %s178 = sshll.u32 %s1, 4
          %s179 = int_to_ptr.hbm [resolvable:$true] %s178
          %s180 = sshll.u32 [#allocation6], 4
          %s181 = int_to_ptr.vmem [resolvable:$true] %s180
          %186 = dma.hbm_to_vmem [thread:$0]  %s179, 1024, %s181, [#allocation7], 64, 64, 4
        $region16: #{_motif_gcn_fused.1} parent=11 // pred_fallthru
          _
      $region12: #{_motif_gcn_fused.1} parent=5 // pred_fallthru
        _
      %p187 = scmp.lt.s32.totalorder %s17, 4
      // Predicated region
      $region17: #{_motif_gcn_fused.1} parent=5 // pred_check
        %p188 = pneg %p187
      $region18: #{_motif_gcn_fused.1} parent=5 // pred_check_branch
        %190 = sbr.rel (%p188) target = $region20
      $region19: #{_motif_gcn_fused.1} parent=5 // pred_region
        // Predicated region
        $region21: #{_motif_gcn_fused.1} parent=19 // pred_check
          %p191 = pneg %p49
        $region22: #{_motif_gcn_fused.1} parent=19 // pred_check_branch
          %193 = sbr.rel (%p191) target = $region24
        $region23: #{_motif_gcn_fused.1} parent=19 // pred_region
          %s194 = sand.u32 %s17, 1
          %s195 = scalar_lea.sflag [#allocation4], %s194
          %s196 = sand.u32 %s39, 1
          %s197 = smul.addr %s196, 64
          %s198 = scalar_lea.vmem [#allocation3], %s197
          %200 = vsyncadd %s195, 0
          %s201 = smul.addr %s24, 16
          %s202 = smul.addr %s201, 4
          %s203 = scalar_lea.hbm %s0, %s202
          %s204 = sshll.u32 %s203, 4
          %s205 = int_to_ptr.hbm [resolvable:$true] %s204
          %s206 = sshll.u32 %s198, 4
          %s207 = int_to_ptr.vmem [resolvable:$true] %s206
          %212 = dma.hbm_to_vmem [thread:$0]  %s205, 1024, %s207, %s195, 64, 64, 4
        $region24: #{_motif_gcn_fused.1} parent=19 // pred_fallthru
          _
        // Predicated region
        $region25: #{_motif_gcn_fused.1} parent=19 // pred_check
          %p213 = pneg %p98
        $region26: #{_motif_gcn_fused.1} parent=19 // pred_check_branch
          %215 = sbr.rel (%p213) target = $region28
        $region27: #{_motif_gcn_fused.1} parent=19 // pred_region
          %s216 = sand.u32 %s17, 1
          %s217 = scalar_lea.sflag [#allocation4], %s216
          %s218 = sand.u32 %s88, 1
          %s219 = smul.addr %s218, 64
          %s220 = scalar_lea.vmem [#allocation8], %s219
          %222 = vsyncadd %s217, 0
          %s223 = smul.addr %s25, 16
          %s224 = smul.addr %s24, 32
          %s225 = sadd.s32 %s223, %s224
          %s226 = smul.addr %s225, 4
          %s227 = scalar_lea.hbm %s2, %s226
          %s228 = sshll.u32 %s227, 4
          %s229 = int_to_ptr.hbm [resolvable:$true] %s228
          %s230 = sshll.u32 %s220, 4
          %s231 = int_to_ptr.vmem [resolvable:$true] %s230
          %236 = dma.hbm_to_vmem [thread:$0]  %s229, 1024, %s231, %s217, 64, 64, 4
        $region28: #{_motif_gcn_fused.1} parent=19 // pred_fallthru
          _
        // Predicated region
        $region29: #{_motif_gcn_fused.1} parent=19 // pred_check
          %p237 = pneg %p126
        $region30: #{_motif_gcn_fused.1} parent=19 // pred_check_branch
          %239 = sbr.rel (%p237) target = $region32
        $region31: #{_motif_gcn_fused.1} parent=19 // pred_region
          %s240 = sand.u32 %s17, 1
          %s241 = scalar_lea.sflag [#allocation4], %s240
          %s242 = sand.u32 %s116, 1
          %s243 = scalar_lea.vmem [#allocation9], %s242
          %245 = vsyncadd %s241, 0
          %s246 = smul.addr %s24, 2
          %s247 = sadd.s32 %s25, %s246
          %s248 = scalar_lea.hbm %s3, %s247
          %s250 = sshll.u32 %s248, 4
          %s251 = int_to_ptr.hbm [resolvable:$true] %s250
          %s252 = sshll.u32 %s243, 4
          %s253 = int_to_ptr.vmem [resolvable:$true] %s252
          %255 = dma.hbm_to_vmem [thread:$0]  %s251, 16, %s253, %s241
        $region32: #{_motif_gcn_fused.1} parent=19 // pred_fallthru
          _
      $region20: #{_motif_gcn_fused.1} parent=5 // pred_fallthru
        _
      %p256 = scmp.le.s32.totalorder 1, %s17
      %p257 = scmp.lt.s32.totalorder %s17, 5
      %p258 = pnand %p256, %p257
      %p259 = pneg %p258
      // Predicated region
      $region33: #{_motif_gcn_fused.1} parent=5 // pred_check
        _
      $region34: #{_motif_gcn_fused.1} parent=5 // pred_check_branch
        %261 = sbr.rel (%p258) target = $region36
      $region35: #{_motif_gcn_fused.1} parent=5 // pred_region
        %s262 = ssub.s32 %s17, 1
        %s263 = sand.u32 %s22, 1
        %s264 = scalar_lea.sflag [#allocation4], %s263
        %s265 = sand.u32 %s42, 1
        %s266 = smul.addr %s265, 64
        %s267 = scalar_lea.vmem [#allocation3], %s266
        // Predicated region
        $region37: #{_motif_gcn_fused.1} parent=35 // pred_check
          %p268 = pneg %p55
        $region38: #{_motif_gcn_fused.1} parent=35 // pred_check_branch
          %270 = sbr.rel (%p268) target = $region40
        $region39: #{_motif_gcn_fused.1} parent=35 // pred_region
          %272 = dma.done %s264, 1024
        $region40: #{_motif_gcn_fused.1} parent=35 // pred_fallthru
          _
        // Predicated region
        $region41: #{_motif_gcn_fused.1} parent=35 // pred_check
          %p273 = pneg %p76
        $region42: #{_motif_gcn_fused.1} parent=35 // pred_check_branch
          %275 = sbr.rel (%p273) target = $region44
        $region43: #{_motif_gcn_fused.1} parent=35 // pred_region
          %277 = dma.done [#allocation7], 1024
        $region44: #{_motif_gcn_fused.1} parent=35 // pred_fallthru
          _
        %s278 = sand.u32 %s22, 1
        %s279 = scalar_lea.sflag [#allocation4], %s278
        %s280 = sand.u32 %s91, 1
        %s281 = smul.addr %s280, 64
        %s282 = scalar_lea.vmem [#allocation8], %s281
        // Predicated region
        $region45: #{_motif_gcn_fused.1} parent=35 // pred_check
          %p283 = pneg %p104
        $region46: #{_motif_gcn_fused.1} parent=35 // pred_check_branch
          %285 = sbr.rel (%p283) target = $region48
        $region47: #{_motif_gcn_fused.1} parent=35 // pred_region
          %287 = dma.done %s279, 1024
        $region48: #{_motif_gcn_fused.1} parent=35 // pred_fallthru
          _
        %s288 = sand.u32 %s22, 1
        %s289 = scalar_lea.sflag [#allocation4], %s288
        %s290 = sand.u32 %s119, 1
        %s291 = scalar_lea.vmem [#allocation9], %s290
        // Predicated region
        $region49: #{_motif_gcn_fused.1} parent=35 // pred_check
          %p292 = pneg %p132
        $region50: #{_motif_gcn_fused.1} parent=35 // pred_check_branch
          %294 = sbr.rel (%p292) target = $region52
        $region51: #{_motif_gcn_fused.1} parent=35 // pred_region
          %296 = dma.done %s289, 16
        $region52: #{_motif_gcn_fused.1} parent=35 // pred_fallthru
          _
        %s297 = sand.u32 %s22, 1
        %s298 = scalar_lea.sflag [#allocation4], %s297
        %s299 = sand.u32 %s42, 1
        %s300 = smul.addr %s299, 64
        %s301 = scalar_lea.vmem [#allocation3], %s300
        %p302 = pneg %p55
        %p303 = pneg %p52
        %p304 = pneg %p76
        %p305 = pneg %p73
        %s306 = sand.u32 %s22, 1
        %s307 = scalar_lea.sflag [#allocation4], %s306
        %s308 = sand.u32 %s91, 1
        %s309 = smul.addr %s308, 64
        %s310 = scalar_lea.vmem [#allocation8], %s309
        %p311 = pneg %p104
        %p312 = pneg %p101
        %s313 = sand.u32 %s22, 1
        %s314 = scalar_lea.sflag [#allocation4], %s313
        %s315 = sand.u32 %s119, 1
        %s316 = scalar_lea.vmem [#allocation9], %s315
        %p317 = pneg %p132
        %p318 = pneg %p129
        %p319 = pneg %p158
        %p320 = pneg %p155
        %s321 = sand.u32 %s145, 1
        %s322 = scalar_lea.sflag [#allocation5], %s321
        %s323 = sand.u32 %s145, 1
        %s324 = smul.addr %s323, 128
        %s325 = scalar_lea.vmem [#allocation10], %s324
        %p326 = scmp.eq.s32.totalorder %s27, 0
        // Predicated region
        $region53: #{_motif_gcn_fused.1} parent=35 // pred_check
          %p327 = pneg %p326
        $region54: #{_motif_gcn_fused.1} parent=35 // pred_check_branch
          %329 = sbr.rel (%p327) target = $region56
        $region55: #{_motif_gcn_fused.1} parent=35 // pred_region
          %v330 = vld [vmem:[#allocation6] sm:$0xf]
          %v331 = vld [vmem:[#allocation6 + $0x4] sm:$0xf]
          %v332 = vld [vmem:[#allocation6 + $0x8] sm:$0xf]
          %v333 = vld [vmem:[#allocation6 + $0xc] sm:$0xf]
          %v334 = vld [vmem:[#allocation6 + $0x10] sm:$0xf]
          %v335 = vld [vmem:[#allocation6 + $0x14] sm:$0xf]
          %v336 = vld [vmem:[#allocation6 + $0x18] sm:$0xf]
          %v337 = vld [vmem:[#allocation6 + $0x1c] sm:$0xf]
          %v338 = vld [vmem:[#allocation6 + $0x20] sm:$0xf]
          %v339 = vld [vmem:[#allocation6 + $0x24] sm:$0xf]
          %v340 = vld [vmem:[#allocation6 + $0x28] sm:$0xf]
          %v341 = vld [vmem:[#allocation6 + $0x2c] sm:$0xf]
          %v342 = vld [vmem:[#allocation6 + $0x30] sm:$0xf]
          %v343 = vld [vmem:[#allocation6 + $0x34] sm:$0xf]
          %v344 = vld [vmem:[#allocation6 + $0x38] sm:$0xf]
          %v345 = vld [vmem:[#allocation6 + $0x3c] sm:$0xf]
          %346 = vst [vmem:[#allocation2] sm:$0xf] %v330
          %347 = vst [vmem:[#allocation2 + $0x4] sm:$0xf] %v331
          %348 = vst [vmem:[#allocation2 + $0x8] sm:$0xf] %v332
          %349 = vst [vmem:[#allocation2 + $0xc] sm:$0xf] %v333
          %350 = vst [vmem:[#allocation2 + $0x10] sm:$0xf] %v334
          %351 = vst [vmem:[#allocation2 + $0x14] sm:$0xf] %v335
          %352 = vst [vmem:[#allocation2 + $0x18] sm:$0xf] %v336
          %353 = vst [vmem:[#allocation2 + $0x1c] sm:$0xf] %v337
          %354 = vst [vmem:[#allocation2 + $0x20] sm:$0xf] %v338
          %355 = vst [vmem:[#allocation2 + $0x24] sm:$0xf] %v339
          %356 = vst [vmem:[#allocation2 + $0x28] sm:$0xf] %v340
          %357 = vst [vmem:[#allocation2 + $0x2c] sm:$0xf] %v341
          %358 = vst [vmem:[#allocation2 + $0x30] sm:$0xf] %v342
          %359 = vst [vmem:[#allocation2 + $0x34] sm:$0xf] %v343
          %360 = vst [vmem:[#allocation2 + $0x38] sm:$0xf] %v344
          %361 = vst [vmem:[#allocation2 + $0x3c] sm:$0xf] %v345
        $region56: #{_motif_gcn_fused.1} parent=35 // pred_fallthru
          _
        %v362 = vld [vmem:[#allocation2] sm:$0xf]
        %v363 = vld [vmem:[#allocation2 + $0x4] sm:$0xf]
        %v364 = vld [vmem:[#allocation2 + $0x8] sm:$0xf]
        %v365 = vld [vmem:[#allocation2 + $0xc] sm:$0xf]
        %v366 = vld [vmem:[#allocation2 + $0x10] sm:$0xf]
        %v367 = vld [vmem:[#allocation2 + $0x14] sm:$0xf]
        %v368 = vld [vmem:[#allocation2 + $0x18] sm:$0xf]
        %v369 = vld [vmem:[#allocation2 + $0x1c] sm:$0xf]
        %v370 = vld [vmem:[#allocation2 + $0x20] sm:$0xf]
        %v371 = vld [vmem:[#allocation2 + $0x24] sm:$0xf]
        %v372 = vld [vmem:[#allocation2 + $0x28] sm:$0xf]
        %v373 = vld [vmem:[#allocation2 + $0x2c] sm:$0xf]
        %v374 = vld [vmem:[#allocation2 + $0x30] sm:$0xf]
        %v375 = vld [vmem:[#allocation2 + $0x34] sm:$0xf]
        %v376 = vld [vmem:[#allocation2 + $0x38] sm:$0xf]
        %v377 = vld [vmem:[#allocation2 + $0x3c] sm:$0xf]
        %v378 = vld [vmem:[%s282] sm:$0xf]
        %v379 = vld [vmem:[%s282 + $0x4] sm:$0xf]
        %v380 = vld [vmem:[%s282 + $0x8] sm:$0xf]
        %v381 = vld [vmem:[%s282 + $0xc] sm:$0xf]
        %v382 = vld [vmem:[%s282 + $0x10] sm:$0xf]
        %v383 = vld [vmem:[%s282 + $0x14] sm:$0xf]
        %v384 = vld [vmem:[%s282 + $0x18] sm:$0xf]
        %v385 = vld [vmem:[%s282 + $0x1c] sm:$0xf]
        %v386 = vld [vmem:[%s282 + $0x20] sm:$0xf]
        %v387 = vld [vmem:[%s282 + $0x24] sm:$0xf]
        %v388 = vld [vmem:[%s282 + $0x28] sm:$0xf]
        %v389 = vld [vmem:[%s282 + $0x2c] sm:$0xf]
        %v390 = vld [vmem:[%s282 + $0x30] sm:$0xf]
        %v391 = vld [vmem:[%s282 + $0x34] sm:$0xf]
        %v392 = vld [vmem:[%s282 + $0x38] sm:$0xf]
        %v393 = vld [vmem:[%s282 + $0x3c] sm:$0xf]
        %v410 = vunpack.c.l.b16 %v362
        %v411 = vunpack.c.l.b16 %v363
        %v412 = vunpack.c.l.b16 %v364
        %v413 = vunpack.c.l.b16 %v365
        %v414 = vunpack.c.l.b16 %v366
        %v415 = vunpack.c.l.b16 %v367
        %v416 = vunpack.c.l.b16 %v368
        %v417 = vunpack.c.l.b16 %v369
        %v418 = vunpack.c.l.b16 %v370
        %v419 = vunpack.c.l.b16 %v371
        %v420 = vunpack.c.l.b16 %v372
        %v421 = vunpack.c.l.b16 %v373
        %v422 = vunpack.c.l.b16 %v374
        %v423 = vunpack.c.l.b16 %v375
        %v424 = vunpack.c.l.b16 %v376
        %v425 = vunpack.c.l.b16 %v377
        %v426 = vpack.c.b16 %v411, %v410
        %v427 = vpack.c.b16 %v413, %v412
        %v428 = vpack.c.b16 %v415, %v414
        %v429 = vpack.c.b16 %v417, %v416
        %v430 = vpack.c.b16 %v419, %v418
        %v431 = vpack.c.b16 %v421, %v420
        %v432 = vpack.c.b16 %v423, %v422
        %v433 = vpack.c.b16 %v425, %v424
        %v458 = vunpack.c.l.b16 %v378
        %v459 = vunpack.c.l.b16 %v379
        %v460 = vunpack.c.l.b16 %v380
        %v461 = vunpack.c.l.b16 %v381
        %v462 = vunpack.c.l.b16 %v382
        %v463 = vunpack.c.l.b16 %v383
        %v464 = vunpack.c.l.b16 %v384
        %v465 = vunpack.c.l.b16 %v385
        %v466 = vunpack.c.l.b16 %v386
        %v467 = vunpack.c.l.b16 %v387
        %v468 = vunpack.c.l.b16 %v388
        %v469 = vunpack.c.l.b16 %v389
        %v470 = vunpack.c.l.b16 %v390
        %v471 = vunpack.c.l.b16 %v391
        %v472 = vunpack.c.l.b16 %v392
        %v473 = vunpack.c.l.b16 %v393
        %v474 = vpack.c.b16 %v459, %v458
        %v475 = vpack.c.b16 %v461, %v460
        %v476 = vpack.c.b16 %v463, %v462
        %v477 = vpack.c.b16 %v465, %v464
        %v478 = vpack.c.b16 %v467, %v466
        %v479 = vpack.c.b16 %v469, %v468
        %v480 = vpack.c.b16 %v471, %v470
        %v481 = vpack.c.b16 %v473, %v472
        %490 = vmatpush.bf16.msra.mxu0 %v481
        %491 = vmatpush.bf16.msra.mxu0 %v480
        %492 = vmatpush.bf16.msra.mxu0 %v479
        %493 = vmatpush.bf16.msra.mxu0 %v478
        %494 = vmatpush.bf16.msra.mxu0 %v477
        %495 = vmatpush.bf16.msra.mxu0 %v476
        %496 = vmatpush.bf16.msra.mxu0 %v475
        %497 = vmatpush.bf16.msra.mxu0 %v474
        %498 = vmatmul.bf16.gmra.mxu0 %v426
        %v499 = vpop.f32.mrf.mxu0
        %v500 = vadd.f32 0.0, %v499
        %v501 = vpop.f32.mrf.mxu0
        %v502 = vadd.f32 0.0, %v501
        %503 = vmatmul.bf16.gmra.mxu0 %v427
        %v504 = vpop.f32.mrf.mxu0
        %v505 = vadd.f32 0.0, %v504
        %v506 = vpop.f32.mrf.mxu0
        %v507 = vadd.f32 0.0, %v506
        %508 = vmatmul.bf16.gmra.mxu0 %v428
        %v509 = vpop.f32.mrf.mxu0
        %v510 = vadd.f32 0.0, %v509
        %v511 = vpop.f32.mrf.mxu0
        %v512 = vadd.f32 0.0, %v511
        %513 = vmatmul.bf16.gmra.mxu0 %v429
        %v514 = vpop.f32.mrf.mxu0
        %v515 = vadd.f32 0.0, %v514
        %v516 = vpop.f32.mrf.mxu0
        %v517 = vadd.f32 0.0, %v516
        %518 = vmatmul.bf16.gmra.mxu0 %v430
        %v519 = vpop.f32.mrf.mxu0
        %v520 = vadd.f32 0.0, %v519
        %v521 = vpop.f32.mrf.mxu0
        %v522 = vadd.f32 0.0, %v521
        %523 = vmatmul.bf16.gmra.mxu0 %v431
        %v524 = vpop.f32.mrf.mxu0
        %v525 = vadd.f32 0.0, %v524
        %v526 = vpop.f32.mrf.mxu0
        %v527 = vadd.f32 0.0, %v526
        %528 = vmatmul.bf16.gmra.mxu0 %v432
        %v529 = vpop.f32.mrf.mxu0
        %v530 = vadd.f32 0.0, %v529
        %v531 = vpop.f32.mrf.mxu0
        %v532 = vadd.f32 0.0, %v531
        %533 = vmatmul.bf16.gmra.mxu0 %v433
        %v534 = vpop.f32.mrf.mxu0
        %v535 = vadd.f32 0.0, %v534
        %v536 = vpop.f32.mrf.mxu0
        %v537 = vadd.f32 0.0, %v536
        %538 = vdwg.mxu0
        %v539 = vld [vmem:[%s267] sm:$0xf]
        %v540 = vld [vmem:[%s267 + $0x4] sm:$0xf]
        %v541 = vld [vmem:[%s267 + $0x8] sm:$0xf]
        %v542 = vld [vmem:[%s267 + $0xc] sm:$0xf]
        %v543 = vld [vmem:[%s267 + $0x10] sm:$0xf]
        %v544 = vld [vmem:[%s267 + $0x14] sm:$0xf]
        %v545 = vld [vmem:[%s267 + $0x18] sm:$0xf]
        %v546 = vld [vmem:[%s267 + $0x1c] sm:$0xf]
        %v547 = vld [vmem:[%s267 + $0x20] sm:$0xf]
        %v548 = vld [vmem:[%s267 + $0x24] sm:$0xf]
        %v549 = vld [vmem:[%s267 + $0x28] sm:$0xf]
        %v550 = vld [vmem:[%s267 + $0x2c] sm:$0xf]
        %v551 = vld [vmem:[%s267 + $0x30] sm:$0xf]
        %v552 = vld [vmem:[%s267 + $0x34] sm:$0xf]
        %v553 = vld [vmem:[%s267 + $0x38] sm:$0xf]
        %v554 = vld [vmem:[%s267 + $0x3c] sm:$0xf]
        %v555 = vpack.c.bf16 %v502, %v500
        %v556 = vpack.c.bf16 %v507, %v505
        %v557 = vpack.c.bf16 %v512, %v510
        %v558 = vpack.c.bf16 %v517, %v515
        %v559 = vpack.c.bf16 %v522, %v520
        %v560 = vpack.c.bf16 %v527, %v525
        %v561 = vpack.c.bf16 %v532, %v530
        %v562 = vpack.c.bf16 %v537, %v535
        %v563 = vld [vmem:[%s291] sm:$0x1]
        %v565 = vperm.slane %v563, 0
        %v583 = vunpack.c.l.b16 %v539
        %v584 = vunpack.c.l.b16 %v540
        %v585 = vunpack.c.l.b16 %v541
        %v586 = vunpack.c.l.b16 %v542
        %v587 = vunpack.c.l.b16 %v543
        %v588 = vunpack.c.l.b16 %v544
        %v589 = vunpack.c.l.b16 %v545
        %v590 = vunpack.c.l.b16 %v546
        %v591 = vunpack.c.l.b16 %v547
        %v592 = vunpack.c.l.b16 %v548
        %v593 = vunpack.c.l.b16 %v549
        %v594 = vunpack.c.l.b16 %v550
        %v595 = vunpack.c.l.b16 %v551
        %v596 = vunpack.c.l.b16 %v552
        %v597 = vunpack.c.l.b16 %v553
        %v598 = vunpack.c.l.b16 %v554
        %v599 = vpack.c.b16 %v584, %v583
        %v600 = vpack.c.b16 %v586, %v585
        %v601 = vpack.c.b16 %v588, %v587
        %v602 = vpack.c.b16 %v590, %v589
        %v603 = vpack.c.b16 %v592, %v591
        %v604 = vpack.c.b16 %v594, %v593
        %v605 = vpack.c.b16 %v596, %v595
        %v606 = vpack.c.b16 %v598, %v597
        %615 = vmatpush.bf16.msra.mxu0 %v562
        %616 = vmatpush.bf16.msra.mxu0 %v561
        %617 = vmatpush.bf16.msra.mxu0 %v560
        %618 = vmatpush.bf16.msra.mxu0 %v559
        %619 = vmatpush.bf16.msra.mxu0 %v558
        %620 = vmatpush.bf16.msra.mxu0 %v557
        %621 = vmatpush.bf16.msra.mxu0 %v556
        %622 = vmatpush.bf16.msra.mxu0 %v555
        %623 = vmatmul.bf16.gmra.mxu0 %v599
        %v624 = vpop.f32.mrf.mxu0
        %v625 = vadd.f32 %v565, %v624
        %v626 = vpop.f32.mrf.mxu0
        %v627 = vadd.f32 %v565, %v626
        %628 = vmatmul.bf16.gmra.mxu0 %v600
        %v629 = vpop.f32.mrf.mxu0
        %v630 = vadd.f32 %v565, %v629
        %v631 = vpop.f32.mrf.mxu0
        %v632 = vadd.f32 %v565, %v631
        %633 = vmatmul.bf16.gmra.mxu0 %v601
        %v634 = vpop.f32.mrf.mxu0
        %v635 = vadd.f32 %v565, %v634
        %v636 = vpop.f32.mrf.mxu0
        %v637 = vadd.f32 %v565, %v636
        %638 = vmatmul.bf16.gmra.mxu0 %v602
        %v639 = vpop.f32.mrf.mxu0
        %v640 = vadd.f32 %v565, %v639
        %v641 = vpop.f32.mrf.mxu0
        %v642 = vadd.f32 %v565, %v641
        %643 = vmatmul.bf16.gmra.mxu0 %v603
        %v644 = vpop.f32.mrf.mxu0
        %v645 = vadd.f32 %v565, %v644
        %v646 = vpop.f32.mrf.mxu0
        %v647 = vadd.f32 %v565, %v646
        %648 = vmatmul.bf16.gmra.mxu0 %v604
        %v649 = vpop.f32.mrf.mxu0
        %v650 = vadd.f32 %v565, %v649
        %v651 = vpop.f32.mrf.mxu0
        %v652 = vadd.f32 %v565, %v651
        %653 = vmatmul.bf16.gmra.mxu0 %v605
        %v654 = vpop.f32.mrf.mxu0
        %v655 = vadd.f32 %v565, %v654
        %v656 = vpop.f32.mrf.mxu0
        %v657 = vadd.f32 %v565, %v656
        %658 = vmatmul.bf16.gmra.mxu0 %v606
        %v659 = vpop.f32.mrf.mxu0
        %v660 = vadd.f32 %v565, %v659
        %v661 = vpop.f32.mrf.mxu0
        %v662 = vadd.f32 %v565, %v661
        %663 = vdwg.mxu0
        %v664 = vmax.f32 %v625, 0.0
        %v665 = vmax.f32 %v627, 0.0
        %v666 = vmax.f32 %v630, 0.0
        %v667 = vmax.f32 %v632, 0.0
        %v668 = vmax.f32 %v635, 0.0
        %v669 = vmax.f32 %v637, 0.0
        %v670 = vmax.f32 %v640, 0.0
        %v671 = vmax.f32 %v642, 0.0
        %v672 = vmax.f32 %v645, 0.0
        %v673 = vmax.f32 %v647, 0.0
        %v674 = vmax.f32 %v650, 0.0
        %v675 = vmax.f32 %v652, 0.0
        %v676 = vmax.f32 %v655, 0.0
        %v677 = vmax.f32 %v657, 0.0
        %v678 = vmax.f32 %v660, 0.0
        %v679 = vmax.f32 %v662, 0.0
        %v680 = vpack.c.bf16 %v664, %v664
        %v681 = vpack.c.bf16 %v665, %v665
        %v682 = vpack.c.bf16 %v666, %v666
        %v683 = vpack.c.bf16 %v667, %v667
        %v684 = vpack.c.bf16 %v668, %v668
        %v685 = vpack.c.bf16 %v669, %v669
        %v686 = vpack.c.bf16 %v670, %v670
        %v687 = vpack.c.bf16 %v671, %v671
        %v688 = vpack.c.bf16 %v672, %v672
        %v689 = vpack.c.bf16 %v673, %v673
        %v690 = vpack.c.bf16 %v674, %v674
        %v691 = vpack.c.bf16 %v675, %v675
        %v692 = vpack.c.bf16 %v676, %v676
        %v693 = vpack.c.bf16 %v677, %v677
        %v694 = vpack.c.bf16 %v678, %v678
        %v695 = vpack.c.bf16 %v679, %v679
        %696 = vst [vmem:[#allocation2] sm:$0xf] %v680
        %697 = vst [vmem:[#allocation2 + $0x4] sm:$0xf] %v681
        %698 = vst [vmem:[#allocation2 + $0x8] sm:$0xf] %v682
        %699 = vst [vmem:[#allocation2 + $0xc] sm:$0xf] %v683
        %700 = vst [vmem:[#allocation2 + $0x10] sm:$0xf] %v684
        %701 = vst [vmem:[#allocation2 + $0x14] sm:$0xf] %v685
        %702 = vst [vmem:[#allocation2 + $0x18] sm:$0xf] %v686
        %703 = vst [vmem:[#allocation2 + $0x1c] sm:$0xf] %v687
        %704 = vst [vmem:[#allocation2 + $0x20] sm:$0xf] %v688
        %705 = vst [vmem:[#allocation2 + $0x24] sm:$0xf] %v689
        %706 = vst [vmem:[#allocation2 + $0x28] sm:$0xf] %v690
        %707 = vst [vmem:[#allocation2 + $0x2c] sm:$0xf] %v691
        %708 = vst [vmem:[#allocation2 + $0x30] sm:$0xf] %v692
        %709 = vst [vmem:[#allocation2 + $0x34] sm:$0xf] %v693
        %710 = vst [vmem:[#allocation2 + $0x38] sm:$0xf] %v694
        %711 = vst [vmem:[#allocation2 + $0x3c] sm:$0xf] %v695
        %p712 = scmp.eq.s32.totalorder %s27, 1
        // Predicated region
        $region57: #{_motif_gcn_fused.1} parent=35 // pred_check
          %p713 = pneg %p712
        $region58: #{_motif_gcn_fused.1} parent=35 // pred_check_branch
          %715 = sbr.rel (%p713) target = $region60
        $region59: #{_motif_gcn_fused.1} parent=35 // pred_region
          %716 = vst [vmem:[%s325] sm:$0xff] %v664
          %717 = vst [vmem:[%s325 + $0x8] sm:$0xff] %v665
          %718 = vst [vmem:[%s325 + $0x10] sm:$0xff] %v666
          %719 = vst [vmem:[%s325 + $0x18] sm:$0xff] %v667
          %720 = vst [vmem:[%s325 + $0x20] sm:$0xff] %v668
          %721 = vst [vmem:[%s325 + $0x28] sm:$0xff] %v669
          %722 = vst [vmem:[%s325 + $0x30] sm:$0xff] %v670
          %723 = vst [vmem:[%s325 + $0x38] sm:$0xff] %v671
          %724 = vst [vmem:[%s325 + $0x40] sm:$0xff] %v672
          %725 = vst [vmem:[%s325 + $0x48] sm:$0xff] %v673
          %726 = vst [vmem:[%s325 + $0x50] sm:$0xff] %v674
          %727 = vst [vmem:[%s325 + $0x58] sm:$0xff] %v675
          %728 = vst [vmem:[%s325 + $0x60] sm:$0xff] %v676
          %729 = vst [vmem:[%s325 + $0x68] sm:$0xff] %v677
          %730 = vst [vmem:[%s325 + $0x70] sm:$0xff] %v678
          %731 = vst [vmem:[%s325 + $0x78] sm:$0xff] %v679
        $region60: #{_motif_gcn_fused.1} parent=35 // pred_fallthru
          _
        %s732 = sand.u32 %s145, 1
        %s733 = scalar_lea.sflag [#allocation5], %s732
        %s734 = sand.u32 %s145, 1
        %s735 = smul.addr %s734, 128
        %s736 = scalar_lea.vmem [#allocation10], %s735
        // Predicated region
        $region61: #{_motif_gcn_fused.1} parent=35 // pred_check
          %p737 = pneg %p155
        $region62: #{_motif_gcn_fused.1} parent=35 // pred_check_branch
          %739 = sbr.rel (%p737) target = $region64
        $region63: #{_motif_gcn_fused.1} parent=35 // pred_region
          %741 = vsyncadd %s733, 0
          %s742 = smul.addr %s26, 16
          %s743 = smul.addr %s742, 8
          %s744 = scalar_lea.hbm %s4, %s743
          %s745 = sshll.u32 %s736, 4
          %s746 = int_to_ptr.vmem [resolvable:$true] %s745
          %s747 = sshll.u32 %s744, 4
          %s748 = int_to_ptr.hbm [resolvable:$true] %s747
          %753 = dma.vmem_to_hbm [thread:$0]  %s746, 2048, %s748, %s733, 128, 128, 8
        $region64: #{_motif_gcn_fused.1} parent=35 // pred_fallthru
          _
      $region36: #{_motif_gcn_fused.1} parent=5 // pred_fallthru
        _
      %p754 = scmp.le.s32.totalorder 2, %s17
      // Predicated region
      $region65: #{_motif_gcn_fused.1} parent=5 // pred_check
        %p755 = pneg %p754
      $region66: #{_motif_gcn_fused.1} parent=5 // pred_check_branch
        %757 = sbr.rel (%p755) target = $region68
      $region67: #{_motif_gcn_fused.1} parent=5 // pred_region
        %s758 = ssub.s32 %s17, 2
        // Predicated region
        $region69: #{_motif_gcn_fused.1} parent=67 // pred_check
          %p759 = pneg %p161
        $region70: #{_motif_gcn_fused.1} parent=67 // pred_check_branch
          %761 = sbr.rel (%p759) target = $region72
        $region71: #{_motif_gcn_fused.1} parent=67 // pred_region
          %s762 = sand.u32 %s146, 1
          %s763 = scalar_lea.sflag [#allocation5], %s762
          %s764 = sand.u32 %s146, 1
          %s765 = smul.addr %s764, 128
          %s766 = scalar_lea.vmem [#allocation10], %s765
          %768 = dma.done %s763, 2048
        $region72: #{_motif_gcn_fused.1} parent=67 // pred_fallthru
          _
      $region68: #{_motif_gcn_fused.1} parent=5 // pred_fallthru
        _
    $region6: #{_motif_gcn_fused.1} parent=1 // loop_footer
      %s21 = sadd.s32 1, %s17
    $region7: #{_motif_gcn_fused.1} parent=1 // loop_footer_branch
      %16 = sbr.rel target = $region3
    $region8: #{_motif_gcn_fused.1} parent=1 // loop_exit
      _
    %769 = vsyncpa [#allocation4], 1
    %s770 = scalar_lea.sflag [#allocation4], 1
    %771 = vsyncpa %s770, 1
    %772 = vsyncpa [#allocation7], 1
    %773 = vsyncpa [#allocation5], 1
    %s774 = scalar_lea.sflag [#allocation5], 1
    %775 = vsyncpa %s774, 1

</llo_original>
